<compile_context>
chip_gen: v7x
topology: tpu7x:2x2x1
jax: 0.10.0
libtpu: 0.0.40
codegen_flags: <defaults>
</compile_context>

<pallas_src>
import functools
import math

import jax
import jax.numpy as jnp
import numpy as np
from jax.experimental import pallas as pl
from jax.experimental.pallas import tpu as pltpu


def _multi_gcn_time_kernel(x_ref, a_ref, wt_ref, b_ref, o_ref, p_ref, *, SO, Bt, N, CL):
    # x_ref:  (Bt, N, C*L)        bf16  node on sublanes, (c, l) on lanes (l fast)
    # a_ref:  (SO*N, N)           bf16  stacked precomputed powers A_s^o (o = 1..order)
    # wt_ref: (M*L, c_out*Lpad)   bf16  block-Toeplitz conv weights (built at init)
    # b_ref:  (1, c_out*Lpad)     f32   lane-dense bias row
    # o_ref:  (Bt, N, c_out*Lpad) f32   columns = (co, t)
    # p_ref:  (Bt, SO*N, C*L)     bf16  VMEM scratch holding the propagated blocks

    # identity block of h: one (Bt*N)-row fused dot against the first C*L rows of WT
    x_all = x_ref[...].reshape(Bt * N, CL)                    # leading-dim merge: free
    acc = jnp.dot(x_all, wt_ref[pl.ds(0, CL), :], preferred_element_type=jnp.float32)

    # graph diffusion: ONE stacked-powers MXU dot per folded batch element (SO*N rows)
    for b in range(Bt):                                       # static unroll, Bt is small
        y = jnp.dot(a_ref[...], x_ref[b], preferred_element_type=jnp.float32)   # (SO*N, CL)
        p_ref[b] = y.astype(p_ref.dtype)

    # fused Conv2d(1,Kt): per diffusion block one (Bt*N)-row dot, accumulated in f32
    for k in range(SO):
        pk = p_ref[:, pl.ds(k * N, N), :].reshape(Bt * N, CL)
        acc = acc + jnp.dot(pk, wt_ref[pl.ds((k + 1) * CL, CL), :],
                            preferred_element_type=jnp.float32)

    o_ref[...] = (acc + b_ref[...]).reshape(Bt, N, -1).astype(o_ref.dtype)


def init_multi_gcn_time(supports, weight, bias, L, *, order=2):
    """Hoisted precompute (static per supports/weights/L): stacked diffusion powers,
    block-Toeplitz Conv2d(1,Kt) weights WT, lane-dense bias row, and shape metadata."""
    S = len(supports)
    N = supports[0].shape[0]
    c_out, M, _, Kt = weight.shape
    C = M // (order * S + 1)
    assert (order * S + 1) * C == M, (M, S, order, C)
    assert L >= Kt, f"L={L} < Kt={Kt}: Conv2d(1,{Kt}) valid output would be empty"
    Lout = L - Kt + 1
    SO = S * order

    # pad the flattened (co, t) lane axis to a multiple of 128 when cheap (unmasked stores)
    step = 128 // math.gcd(c_out, 128)
    Lpad = ((Lout + step - 1) // step) * step
    if Lpad > max(2 * Lout, L):
        Lpad = Lout

    # stacked powers [A_0, A_0^2, ..., A_{S-1}^order] in f32, single bf16 cast at the end
    hp = jax.lax.Precision.HIGHEST
    pows = []
    for A in supports:
        Af = jnp.asarray(A, jnp.float32)
        P = Af
        pows.append(P)
        for _ in range(order - 1):
            P = jnp.matmul(Af, P, precision=hp)
            pows.append(P)
    a_stack = jnp.concatenate(pows, axis=0).astype(jnp.bfloat16)          # (SO*N, N)

    # block-Toeplitz weights: WT[(m,l),(co,t)] = W[co,m,l-t] if 0 <= l-t < Kt and t < Lout
    W3 = weight.reshape(c_out, M, Kt).astype(jnp.float32)
    dt_i = jnp.arange(Kt)[:, None, None]
    l_i = jnp.arange(L)[None, :, None]
    t_i = jnp.arange(Lpad)[None, None, :]
    D = ((l_i == t_i + dt_i) & (t_i < Lout)).astype(jnp.float32)          # [Kt, L, Lpad]
    WT = jnp.einsum('omk,klt->mlot', W3, D).reshape(M * L, c_out * Lpad).astype(jnp.bfloat16)

    bias_row = jnp.tile(jnp.asarray(bias, jnp.float32)[:, None],
                        (1, Lpad)).reshape(1, c_out * Lpad)

    return dict(a_stack=a_stack, WT=WT, bias_row=bias_row,
                S=S, order=order, SO=SO, N=N, C=C, M=M, L=L, Kt=Kt,
                Lout=Lout, Lpad=Lpad, c_out=c_out)


def multi_gcn_time_forward(x, params):
    """x:[B, c_in, N, L] -> [B, c_out, N, L-Kt+1]. Inference forward."""
    # TODO(synk): training-mode dropout (F.dropout with training=True) is not implemented.
    p = params
    SO, N, C, L, M = p['SO'], p['N'], p['C'], p['L'], p['M']
    c_out, Lout, Lpad = p['c_out'], p['Lout'], p['Lpad']
    B = x.shape[0]
    assert x.shape == (B, C, N, L), (x.shape, (B, C, N, L))
    CL = C * L
    COL = c_out * Lpad

    # fold Bt batch elements per grid step so the fused conv dot has ~256 rows,
    # but keep the per-step blocks within a conservative VMEM budget.
    Bt = max(1, min(B, -(-256 // N)))

    def _step_bytes(bt):
        return (2 * bt * N * CL * 2            # x block, double-buffered
                + 2 * bt * N * COL * 4         # out block, double-buffered
                + bt * SO * N * CL * 2)        # propagated-block scratch

    while Bt > 1 and _step_bytes(Bt) > (8 << 20):
        Bt = max(1, Bt // 2)
    n_steps = -(-B // Bt)
    B_pad = n_steps * Bt

    # x -> [B_pad, N, C*L]: node on sublanes, (c, l) on lanes (l fast); bf16 MXU input
    x_in = jnp.transpose(x, (0, 2, 1, 3)).reshape(B, N, CL).astype(jnp.bfloat16)
    if B_pad != B:
        x_in = jnp.pad(x_in, ((0, B_pad - B), (0, 0), (0, 0)))

    # explicit VMEM budget (constants still double-buffered by default); only override the
    # scoped default when it is actually needed (keeps small configs on known-good defaults).
    const_bytes = 2 * (p['a_stack'].size * 2 + p['WT'].size * 2 + p['bias_row'].size * 4)
    need_bytes = int(_step_bytes(Bt) + const_bytes + (1 << 20))
    vmem_limit = need_bytes if need_bytes > (16 << 20) else None

    flops = 2 * B_pad * (SO * N * N * CL + (SO + 1) * N * CL * COL)
    bytes_accessed = (B_pad * N * CL * 2 + p['a_stack'].size * 2 + p['WT'].size * 2
                      + p['bias_row'].size * 4 + B_pad * N * COL * 4)

    kern = functools.partial(_multi_gcn_time_kernel, SO=SO, Bt=Bt, N=N, CL=CL)
    out_flat = pl.pallas_call(
        kern,
        out_shape=jax.ShapeDtypeStruct((B_pad, N, COL), jnp.float32),
        grid=(n_steps,),
        in_specs=[
            pl.BlockSpec((Bt, N, CL), lambda g: (g, 0, 0)),
            pl.BlockSpec((SO * N, N), lambda g: (0, 0)),        # constant block -> fetched once
            pl.BlockSpec((M * L, COL), lambda g: (0, 0)),       # constant block -> fetched once
            pl.BlockSpec((1, COL), lambda g: (0, 0)),
        ],
        out_specs=pl.BlockSpec((Bt, N, COL), lambda g: (g, 0, 0)),
        scratch_shapes=[pltpu.VMEM((Bt, SO * N, CL), jnp.bfloat16)],
        compiler_params=pltpu.CompilerParams(
            dimension_semantics=("parallel",),
            vmem_limit_bytes=vmem_limit),
        cost_estimate=pl.CostEstimate(flops=int(flops), transcendentals=0,
                                      bytes_accessed=int(bytes_accessed)),
    )(x_in, p['a_stack'], p['WT'], p['bias_row'])

    # [B, N, (co, t)] -> NCHW [B, c_out, N, Lout]
    out = out_flat[:B].reshape(B, N, c_out, Lpad)
    return jnp.transpose(out, (0, 2, 1, 3))[..., :Lout]


def ref_forward(x, supports, weight, bias, *, order=2):
    """Pure-JAX mirror of the PyTorch forward (for validation)."""
    B, C, N, L = x.shape
    c_out, M, _, Kt = weight.shape
    Lout = L - Kt + 1
    hp = jax.lax.Precision.HIGHEST
    out = [x]
    for A in supports:
        x1 = jnp.einsum('bcvl,wv->bcwl', x, A, precision=hp)
        out.append(x1)
        for _ in range(2, order + 1):
            x1 = jnp.einsum('bcvl,wv->bcwl', x1, A, precision=hp)
            out.append(x1)
    h = jnp.concatenate(out, axis=1)                                      # [B, M, N, L]
    W3 = weight.reshape(c_out, M, Kt)
    o = jnp.zeros((B, c_out, N, Lout), jnp.float32)
    for dt in range(Kt):
        o = o + jnp.einsum('om,bmnl->bonl', W3[:, :, dt],
                           h[:, :, :, dt:dt + Lout], precision=hp)
    return o + bias.reshape(1, c_out, 1, 1)


if __name__ == "__main__":
    key = jax.random.PRNGKey(0)
    B, c_in, N, L = 2, 4, 16, 16
    c_out, Kt = 8, 3
    support_len, order = 3, 2
    M = (order * support_len + 1) * c_in

    keys = jax.random.split(key, 3 + support_len)
    x = jax.random.normal(keys[0], (B, c_in, N, L), jnp.float32)
    supports = [jax.random.normal(keys[3 + s], (N, N), jnp.float32) / jnp.sqrt(N)
                for s in range(support_len)]

    # Conv2d-style deterministic init
    fan_in = M * Kt
    bound = 1.0 / np.sqrt(fan_in)
    weight = jax.random.uniform(keys[1], (c_out, M, 1, Kt), jnp.float32, -bound, bound)
    bias = jax.random.uniform(keys[2], (c_out,), jnp.float32, -bound, bound)

    params = init_multi_gcn_time(supports, weight, bias, L, order=order)
    out = multi_gcn_time_forward(x, params)
    out = jax.block_until_ready(out)

    ref = ref_forward(x, supports, weight, bias, order=order)
    assert out.shape == (B, c_out, N, L - Kt + 1), out.shape
    err = float(jnp.max(jnp.abs(out - ref)))
    if not np.allclose(np.asarray(out), np.asarray(ref), rtol=2e-2, atol=2e-2):
        raise AssertionError(f"mismatch, max abs err = {err}")
    print("KERNEL_OK")
</pallas_src>

<mosaic_0001>
module attributes {stable_mosaic.version = 11 : i64} {
  func.func @_multi_gcn_time_kernel(%arg0: i32, %arg1: memref<2x16x64xbf16, #tpu.memory_space<vmem>>, %arg2: memref<96x16xbf16, #tpu.memory_space<vmem>>, %arg3: memref<448x128xbf16, #tpu.memory_space<vmem>>, %arg4: memref<1x128xf32, #tpu.memory_space<vmem>>, %arg5: memref<2x16x128xf32, #tpu.memory_space<vmem>>, %arg6: memref<2x96x64xbf16, #tpu.memory_space<vmem>>) attributes {dimension_semantics = [#tpu.dimension_semantics<parallel>], iteration_bounds = array<i64: 1>, scalar_prefetch = 0 : i64, scratch_operands = 1 : i64, tpu.core_type = #tpu.core_type<tc>, window_params = [{transform_indices = @transform_0, window_bounds = array<i64: 2, 16, 64>}, {pipeline_mode = #tpu.pipeline_mode<synchronous>, transform_indices = @transform_1, window_bounds = array<i64: 96, 16>}, {pipeline_mode = #tpu.pipeline_mode<synchronous>, transform_indices = @transform_2, window_bounds = array<i64: 448, 128>}, {pipeline_mode = #tpu.pipeline_mode<synchronous>, transform_indices = @transform_3, window_bounds = array<i64: 1, 128>}, {transform_indices = @transform_4, window_bounds = array<i64: 2, 16, 128>}]} {
    %c0 = arith.constant 0 : index
    %c0_0 = arith.constant 0 : index
    %c0_1 = arith.constant 0 : index
    %0 = vector.load %arg1[%c0, %c0_0, %c0_1] : memref<2x16x64xbf16, #tpu.memory_space<vmem>>, vector<2x16x64xbf16>
    %1 = vector.shape_cast %0 : vector<2x16x64xbf16> to vector<32x64xbf16>
    %c0_2 = arith.constant 0 : index
    %c0_3 = arith.constant 0 : index
    %2 = vector.load %arg3[%c0_2, %c0_3] : memref<448x128xbf16, #tpu.memory_space<vmem>>, vector<64x128xbf16>
    %cst = arith.constant dense<0.000000e+00> : vector<32x128xf32>
    %3 = tpu.matmul %1, %2, %cst {dimension_numbers = #tpu.dot_dimension_numbers<[1], [0], [0], [1], [0, 0, 1, 1], [], []>} : vector<32x64xbf16>, vector<64x128xbf16>, vector<32x128xf32> -> vector<32x128xf32>
    %c0_4 = arith.constant 0 : index
    %c0_5 = arith.constant 0 : index
    %4 = vector.load %arg2[%c0_4, %c0_5] : memref<96x16xbf16, #tpu.memory_space<vmem>>, vector<96x16xbf16>
    %c0_6 = arith.constant 0 : index
    %c0_7 = arith.constant 0 : index
    %c0_8 = arith.constant 0 : index
    %5 = vector.load %arg1[%c0_6, %c0_7, %c0_8] : memref<2x16x64xbf16, #tpu.memory_space<vmem>>, vector<1x16x64xbf16>
    %6 = vector.shape_cast %5 : vector<1x16x64xbf16> to vector<16x64xbf16>
    %cst_9 = arith.constant dense<0.000000e+00> : vector<96x64xf32>
    %7 = tpu.matmul %4, %6, %cst_9 {dimension_numbers = #tpu.dot_dimension_numbers<[1], [0], [0], [1], [0, 0, 1, 1], [], []>} : vector<96x16xbf16>, vector<16x64xbf16>, vector<96x64xf32> -> vector<96x64xf32>
    %8 = arith.truncf %7 : vector<96x64xf32> to vector<96x64xbf16>
    %c0_10 = arith.constant 0 : index
    %c0_11 = arith.constant 0 : index
    %c0_12 = arith.constant 0 : index
    %9 = vector.load %arg6[%c0_10, %c0_11, %c0_12] : memref<2x96x64xbf16, #tpu.memory_space<vmem>>, vector<1x96x64xbf16>
    %10 = vector.shape_cast %9 : vector<1x96x64xbf16> to vector<96x64xbf16>
    %11 = vector.shape_cast %8 : vector<96x64xbf16> to vector<1x96x64xbf16>
    tpu.vector_store %arg6[%c0_10, %c0_11, %c0_12], %11 {strides = array<i32>} : memref<2x96x64xbf16, #tpu.memory_space<vmem>>, vector<1x96x64xbf16>,
    %c0_13 = arith.constant 0 : index
    %c0_14 = arith.constant 0 : index
    %12 = vector.load %arg2[%c0_13, %c0_14] : memref<96x16xbf16, #tpu.memory_space<vmem>>, vector<96x16xbf16>
    %c1 = arith.constant 1 : index
    %c0_15 = arith.constant 0 : index
    %c0_16 = arith.constant 0 : index
    %13 = vector.load %arg1[%c1, %c0_15, %c0_16] : memref<2x16x64xbf16, #tpu.memory_space<vmem>>, vector<1x16x64xbf16>
    %14 = vector.shape_cast %13 : vector<1x16x64xbf16> to vector<16x64xbf16>
    %cst_17 = arith.constant dense<0.000000e+00> : vector<96x64xf32>
    %15 = tpu.matmul %12, %14, %cst_17 {dimension_numbers = #tpu.dot_dimension_numbers<[1], [0], [0], [1], [0, 0, 1, 1], [], []>} : vector<96x16xbf16>, vector<16x64xbf16>, vector<96x64xf32> -> vector<96x64xf32>
    %16 = arith.truncf %15 : vector<96x64xf32> to vector<96x64xbf16>
    %c1_18 = arith.constant 1 : index
    %c0_19 = arith.constant 0 : index
    %c0_20 = arith.constant 0 : index
    %17 = vector.load %arg6[%c1_18, %c0_19, %c0_20] : memref<2x96x64xbf16, #tpu.memory_space<vmem>>, vector<1x96x64xbf16>
    %18 = vector.shape_cast %17 : vector<1x96x64xbf16> to vector<96x64xbf16>
    %19 = vector.shape_cast %16 : vector<96x64xbf16> to vector<1x96x64xbf16>
    tpu.vector_store %arg6[%c1_18, %c0_19, %c0_20], %19 {strides = array<i32>} : memref<2x96x64xbf16, #tpu.memory_space<vmem>>, vector<1x96x64xbf16>,
    %c0_21 = arith.constant 0 : index
    %c0_22 = arith.constant 0 : index
    %c0_23 = arith.constant 0 : index
    %20 = vector.load %arg6[%c0_21, %c0_22, %c0_23] : memref<2x96x64xbf16, #tpu.memory_space<vmem>>, vector<2x16x64xbf16>
    %21 = vector.shape_cast %20 : vector<2x16x64xbf16> to vector<32x64xbf16>
    %c64 = arith.constant 64 : index
    %c0_24 = arith.constant 0 : index
    %22 = vector.load %arg3[%c64, %c0_24] : memref<448x128xbf16, #tpu.memory_space<vmem>>, vector<64x128xbf16>
    %cst_25 = arith.constant dense<0.000000e+00> : vector<32x128xf32>
    %23 = tpu.matmul %21, %22, %cst_25 {dimension_numbers = #tpu.dot_dimension_numbers<[1], [0], [0], [1], [0, 0, 1, 1], [], []>} : vector<32x64xbf16>, vector<64x128xbf16>, vector<32x128xf32> -> vector<32x128xf32>
    %24 = arith.addf %3, %23 : vector<32x128xf32>
    %c0_26 = arith.constant 0 : index
    %c16 = arith.constant 16 : index
    %c0_27 = arith.constant 0 : index
    %25 = vector.load %arg6[%c0_26, %c16, %c0_27] : memref<2x96x64xbf16, #tpu.memory_space<vmem>>, vector<2x16x64xbf16>
    %26 = vector.shape_cast %25 : vector<2x16x64xbf16> to vector<32x64xbf16>
    %c128 = arith.constant 128 : index
    %c0_28 = arith.constant 0 : index
    %27 = vector.load %arg3[%c128, %c0_28] : memref<448x128xbf16, #tpu.memory_space<vmem>>, vector<64x128xbf16>
    %cst_29 = arith.constant dense<0.000000e+00> : vector<32x128xf32>
    %28 = tpu.matmul %26, %27, %cst_29 {dimension_numbers = #tpu.dot_dimension_numbers<[1], [0], [0], [1], [0, 0, 1, 1], [], []>} : vector<32x64xbf16>, vector<64x128xbf16>, vector<32x128xf32> -> vector<32x128xf32>
    %29 = arith.addf %24, %28 : vector<32x128xf32>
    %c0_30 = arith.constant 0 : index
    %c32 = arith.constant 32 : index
    %c0_31 = arith.constant 0 : index
    %30 = vector.load %arg6[%c0_30, %c32, %c0_31] : memref<2x96x64xbf16, #tpu.memory_space<vmem>>, vector<2x16x64xbf16>
    %31 = vector.shape_cast %30 : vector<2x16x64xbf16> to vector<32x64xbf16>
    %c192 = arith.constant 192 : index
    %c0_32 = arith.constant 0 : index
    %32 = vector.load %arg3[%c192, %c0_32] : memref<448x128xbf16, #tpu.memory_space<vmem>>, vector<64x128xbf16>
    %cst_33 = arith.constant dense<0.000000e+00> : vector<32x128xf32>
    %33 = tpu.matmul %31, %32, %cst_33 {dimension_numbers = #tpu.dot_dimension_numbers<[1], [0], [0], [1], [0, 0, 1, 1], [], []>} : vector<32x64xbf16>, vector<64x128xbf16>, vector<32x128xf32> -> vector<32x128xf32>
    %34 = arith.addf %29, %33 : vector<32x128xf32>
    %c0_34 = arith.constant 0 : index
    %c48 = arith.constant 48 : index
    %c0_35 = arith.constant 0 : index
    %35 = vector.load %arg6[%c0_34, %c48, %c0_35] : memref<2x96x64xbf16, #tpu.memory_space<vmem>>, vector<2x16x64xbf16>
    %36 = vector.shape_cast %35 : vector<2x16x64xbf16> to vector<32x64xbf16>
    %c256 = arith.constant 256 : index
    %c0_36 = arith.constant 0 : index
    %37 = vector.load %arg3[%c256, %c0_36] : memref<448x128xbf16, #tpu.memory_space<vmem>>, vector<64x128xbf16>
    %cst_37 = arith.constant dense<0.000000e+00> : vector<32x128xf32>
    %38 = tpu.matmul %36, %37, %cst_37 {dimension_numbers = #tpu.dot_dimension_numbers<[1], [0], [0], [1], [0, 0, 1, 1], [], []>} : vector<32x64xbf16>, vector<64x128xbf16>, vector<32x128xf32> -> vector<32x128xf32>
    %39 = arith.addf %34, %38 : vector<32x128xf32>
    %c0_38 = arith.constant 0 : index
    %c64_39 = arith.constant 64 : index
    %c0_40 = arith.constant 0 : index
    %40 = vector.load %arg6[%c0_38, %c64_39, %c0_40] : memref<2x96x64xbf16, #tpu.memory_space<vmem>>, vector<2x16x64xbf16>
    %41 = vector.shape_cast %40 : vector<2x16x64xbf16> to vector<32x64xbf16>
    %c320 = arith.constant 320 : index
    %c0_41 = arith.constant 0 : index
    %42 = vector.load %arg3[%c320, %c0_41] : memref<448x128xbf16, #tpu.memory_space<vmem>>, vector<64x128xbf16>
    %cst_42 = arith.constant dense<0.000000e+00> : vector<32x128xf32>
    %43 = tpu.matmul %41, %42, %cst_42 {dimension_numbers = #tpu.dot_dimension_numbers<[1], [0], [0], [1], [0, 0, 1, 1], [], []>} : vector<32x64xbf16>, vector<64x128xbf16>, vector<32x128xf32> -> vector<32x128xf32>
    %44 = arith.addf %39, %43 : vector<32x128xf32>
    %c0_43 = arith.constant 0 : index
    %c80 = arith.constant 80 : index
    %c0_44 = arith.constant 0 : index
    %45 = vector.load %arg6[%c0_43, %c80, %c0_44] : memref<2x96x64xbf16, #tpu.memory_space<vmem>>, vector<2x16x64xbf16>
    %46 = vector.shape_cast %45 : vector<2x16x64xbf16> to vector<32x64xbf16>
    %c384 = arith.constant 384 : index
    %c0_45 = arith.constant 0 : index
    %47 = vector.load %arg3[%c384, %c0_45] : memref<448x128xbf16, #tpu.memory_space<vmem>>, vector<64x128xbf16>
    %cst_46 = arith.constant dense<0.000000e+00> : vector<32x128xf32>
    %48 = tpu.matmul %46, %47, %cst_46 {dimension_numbers = #tpu.dot_dimension_numbers<[1], [0], [0], [1], [0, 0, 1, 1], [], []>} : vector<32x64xbf16>, vector<64x128xbf16>, vector<32x128xf32> -> vector<32x128xf32>
    %49 = arith.addf %44, %48 : vector<32x128xf32>
    %c0_47 = arith.constant 0 : index
    %c0_48 = arith.constant 0 : index
    %50 = vector.load %arg4[%c0_47, %c0_48] : memref<1x128xf32, #tpu.memory_space<vmem>>, vector<1x128xf32>
    %51 = vector.broadcast %50 : vector<1x128xf32> to vector<32x128xf32>
    %52 = arith.addf %49, %51 : vector<32x128xf32>
    %53 = vector.shape_cast %52 : vector<32x128xf32> to vector<2x16x128xf32>
    %c0_49 = arith.constant 0 : index
    %c0_50 = arith.constant 0 : index
    %c0_51 = arith.constant 0 : index
    %54 = vector.load %arg5[%c0_49, %c0_50, %c0_51] : memref<2x16x128xf32, #tpu.memory_space<vmem>>, vector<2x16x128xf32>
    tpu.vector_store %arg5[%c0_49, %c0_50, %c0_51], %53 {strides = array<i32>} : memref<2x16x128xf32, #tpu.memory_space<vmem>>, vector<2x16x128xf32>,
    return
  }
  func.func @transform_0(%arg0: i32) -> (i32, i32, i32) {
    %c0_i32 = arith.constant 0 : i32
    %c0_i32_0 = arith.constant 0 : i32
    %c0_i32_1 = arith.constant 0 : i32
    return %arg0, %c0_i32, %c0_i32_0 : i32, i32, i32
  }
  func.func @transform_1(%arg0: i32) -> (i32, i32) {
    %c0_i32 = arith.constant 0 : i32
    %c0_i32_0 = arith.constant 0 : i32
    %c0_i32_1 = arith.constant 0 : i32
    return %c0_i32, %c0_i32_0 : i32, i32
  }
  func.func @transform_2(%arg0: i32) -> (i32, i32) {
    %c0_i32 = arith.constant 0 : i32
    %c0_i32_0 = arith.constant 0 : i32
    %c0_i32_1 = arith.constant 0 : i32
    return %c0_i32, %c0_i32_0 : i32, i32
  }
  func.func @transform_3(%arg0: i32) -> (i32, i32) {
    %c0_i32 = arith.constant 0 : i32
    %c0_i32_0 = arith.constant 0 : i32
    %c0_i32_1 = arith.constant 0 : i32
    return %c0_i32, %c0_i32_0 : i32, i32
  }
  func.func @transform_4(%arg0: i32) -> (i32, i32, i32) {
    %c0_i32 = arith.constant 0 : i32
    %c0_i32_0 = arith.constant 0 : i32
    %c0_i32_1 = arith.constant 0 : i32
    return %arg0, %c0_i32, %c0_i32_0 : i32, i32, i32
  }
}

</mosaic_0001>

<llo_original>
// kernel: tpu_custom_call.1
$region0: #{tpu_custom_call.1}
  #allocation0 [shape = 'u32[]', space=smem, size = 0x4, offset = 0x4, fixed_abs, tag = 'smem constant byte address 0x4 - core index']
  #allocation1 [shape = 'u32[144,128]{1,0:T(1,128)}', space=vmem, size = 0x12000, scoped, tag = 'internal scratch']
  #allocation2 [shape = 'bf16[2,96,64]{2,1,0:T(16,128)(2,1)}', space=vmem, size = 0xc000, scoped, tag = 'scratch operand']
  %s0 = inlined_call_operand.vmem [shape: bf16[2,16,64], index: 0, kind: input, shape index: {}]
  %s1 = inlined_call_operand.vmem [shape: bf16[96,16], index: 1, kind: input, shape index: {}]
  %s2 = inlined_call_operand.hbm [shape: bf16[448,128], index: 2, kind: input, shape index: {}]
  %s3 = inlined_call_operand.vmem [shape: f32[1,128], index: 3, kind: input, shape index: {}]
  %s4 = inlined_call_operand.hbm [shape: f32[2,16,128], index: 4, kind: output, shape index: {}]
  %s5 = sld [smem:[#allocation0]]
  $region30: #{tpu_custom_call.1} parent=0
    _
  %s7 = ssub.s32 1, %s5
  %s8 = scalar_select 0, %s7, %s5
  $region1: #{tpu_custom_call.1} parent=0
    #allocation3 [shape = 'u8[114688]{0}', space=vmem, size = 0x1c000, scoped, tag = 'input window, operand 2, single buffered']
    #allocation4 [shape = 's32[1]{0}', space=sflag, size = 0x4, scoped, tag = 'scoped memory for tpu_custom_call.1']
    #allocation5 [shape = 's32[1]{0}', space=sflag, size = 0x4, scoped, tag = 'scoped memory for tpu_custom_call.1']
    #allocation6 [shape = 'u8[16384]{0}', space=vmem, size = 0x4000, scoped, tag = 'output window, operand 0, single buffered']
    %9 = vsyncpa [#allocation4], 0
    %10 = vsyncpa [#allocation5], 0
    // Predicated region
    $region2: #{tpu_custom_call.1} parent=1 // pred_check
      _
    $region3: #{tpu_custom_call.1} parent=1 // pred_check_branch
      %12 = sbr.rel (0) target = $region5
    $region4: #{tpu_custom_call.1} parent=1 // pred_region
      _
    $region5: #{tpu_custom_call.1} parent=1 // pred_fallthru
      _
    // Predicated region
    $region6: #{tpu_custom_call.1} parent=1 // pred_check
      _
    $region7: #{tpu_custom_call.1} parent=1 // pred_check_branch
      %14 = sbr.rel (0) target = $region9
    $region8: #{tpu_custom_call.1} parent=1 // pred_region
      _
    $region9: #{tpu_custom_call.1} parent=1 // pred_fallthru
      _
    // Predicated region
    $region10: #{tpu_custom_call.1} parent=1 // pred_check
      _
    $region11: #{tpu_custom_call.1} parent=1 // pred_check_branch
      %16 = sbr.rel (0) target = $region13
    $region12: #{tpu_custom_call.1} parent=1 // pred_region
      %s18 = ssub.s32 3584, 3584
      %19 = vsyncadd [#allocation4], %s18
      %s20 = sshll.u32 [#allocation3], 4
      %s21 = int_to_ptr.vmem [resolvable:$true] %s20
      %26 = dma.hbm_to_vmem [thread:$0]  %s2, 3584, %s21, [#allocation4], 64, 64, 4
    $region13: #{tpu_custom_call.1} parent=1 // pred_fallthru
      _
    // Predicated region
    $region14: #{tpu_custom_call.1} parent=1 // pred_check
      _
    $region15: #{tpu_custom_call.1} parent=1 // pred_check_branch
      %28 = sbr.rel (0) target = $region17
    $region16: #{tpu_custom_call.1} parent=1 // pred_region
      _
    $region17: #{tpu_custom_call.1} parent=1 // pred_fallthru
      _
    // Predicated region
    $region18: #{tpu_custom_call.1} parent=1 // pred_check
      _
    $region19: #{tpu_custom_call.1} parent=1 // pred_check_branch
      %30 = sbr.rel (0) target = $region21
    $region20: #{tpu_custom_call.1} parent=1 // pred_region
      %31 = dma.done [#allocation4], 3584
    $region21: #{tpu_custom_call.1} parent=1 // pred_fallthru
      _
    %v33 = vld [vmem:[%s0] sm:$0xf]
    %v34 = vld [vmem:[%s0 + $0x4] sm:$0xf]
    %v35 = vld [vmem:[%s0 + $0x8] sm:$0xf]
    %v36 = vld [vmem:[%s0 + $0xc] sm:$0xf]
    %v37 = vld [vmem:[#allocation3] sm:$0xf]
    %v38 = vld [vmem:[#allocation3 + $0x4] sm:$0xf]
    %v39 = vld [vmem:[#allocation3 + $0x8] sm:$0xf]
    %v40 = vld [vmem:[#allocation3 + $0xc] sm:$0xf]
    %v41 = vld [vmem:[#allocation3 + $0x10] sm:$0xf]
    %v42 = vld [vmem:[#allocation3 + $0x14] sm:$0xf]
    %v43 = vld [vmem:[#allocation3 + $0x18] sm:$0xf]
    %v44 = vld [vmem:[#allocation3 + $0x1c] sm:$0xf]
    %v45 = vld [vmem:[%s1] sm:$0xf]
    %v46 = vld [vmem:[%s1 + $0x4] sm:$0xf]
    %v47 = vld [vmem:[%s1 + $0x8] sm:$0xf]
    %v48 = vld [vmem:[%s1 + $0xc] sm:$0xf]
    %v49 = vld [vmem:[%s1 + $0x10] sm:$0xf]
    %v50 = vld [vmem:[%s1 + $0x14] sm:$0xf]
    %v51 = vld [vmem:[%s1 + $0x18] sm:$0xf]
    %v52 = vld [vmem:[%s1 + $0x1c] sm:$0xf]
    %v53 = vld [vmem:[%s1 + $0x20] sm:$0xf]
    %v54 = vld [vmem:[%s1 + $0x24] sm:$0xf]
    %v55 = vld [vmem:[%s1 + $0x28] sm:$0xf]
    %v56 = vld [vmem:[%s1 + $0x2c] sm:$0xf]
    %v69 = vunpack.c.l.b16 %v45
    %v70 = vunpack.c.l.b16 %v46
    %v71 = vunpack.c.l.b16 %v47
    %v72 = vunpack.c.l.b16 %v48
    %v73 = vunpack.c.l.b16 %v49
    %v74 = vunpack.c.l.b16 %v50
    %v75 = vunpack.c.l.b16 %v51
    %v76 = vunpack.c.l.b16 %v52
    %v77 = vunpack.c.l.b16 %v53
    %v78 = vunpack.c.l.b16 %v54
    %v79 = vunpack.c.l.b16 %v55
    %v80 = vunpack.c.l.b16 %v56
    %v81 = vpack.c.b16 %v70, %v69
    %v82 = vpack.c.b16 %v72, %v71
    %v83 = vpack.c.b16 %v74, %v73
    %v84 = vpack.c.b16 %v76, %v75
    %v85 = vpack.c.b16 %v78, %v77
    %v86 = vpack.c.b16 %v80, %v79
    %v89 = vunpack.c.l.b16 %v33
    %v90 = vunpack.c.l.b16 %v34
    %v91 = vpack.c.b16 %v90, %v89
    %vm93 = vcmask 130048
    %v95 = vsel %vm93, %v81, 0
    %v98 = vsel %vm93, %v82, 0
    %v101 = vsel %vm93, %v83, 0
    %v104 = vsel %vm93, %v84, 0
    %v107 = vsel %vm93, %v85, 0
    %v110 = vsel %vm93, %v86, 0
    %112 = vmatprep.subr.bf16.mxu0 0
    %113 = vmatpush1.bf16.msra.mxu0 %v91
    %114 = vmatprep.subr.bf16.mxu0 0
    %115 = vmatpush1.bf16.msra.mxu0 0
    %116 = vmatprep.subr.bf16.mxu0 0
    %117 = vmatpush1.bf16.msra.mxu0 0
    %118 = vmatprep.subr.bf16.mxu0 0
    %119 = vmatpush1.bf16.msra.mxu0 0
    %120 = vmatprep.subr.bf16.mxu0 0
    %121 = vmatpush1.bf16.msra.mxu0 0
    %122 = vmatprep.subr.bf16.mxu0 0
    %123 = vmatpush1.bf16.msra.mxu0 0
    %124 = vmatprep.subr.bf16.mxu0 0
    %125 = vmatpush1.bf16.msra.mxu0 0
    %126 = vmatprep.subr.bf16.mxu0 0
    %127 = vmatpush1.bf16.msra.mxu0 0
    %128 = vmatprep.subr.bf16.mxu0 0
    %129 = vmatpush1.bf16.msra.mxu0 0
    %130 = vmatprep.subr.bf16.mxu0 0
    %131 = vmatpush1.bf16.msra.mxu0 0
    %132 = vmatprep.subr.bf16.mxu0 0
    %133 = vmatpush1.bf16.msra.mxu0 0
    %134 = vmatprep.subr.bf16.mxu0 0
    %135 = vmatpush1.bf16.msra.mxu0 0
    %136 = vmatprep.subr.bf16.mxu0 0
    %137 = vmatpush1.bf16.msra.mxu0 0
    %138 = vmatprep.subr.bf16.mxu0 0
    %139 = vmatpush1.bf16.msra.mxu0 0
    %140 = vmatprep.subr.bf16.mxu0 0
    %141 = vmatpush1.bf16.msra.mxu0 0
    %142 = vmatprep.subr.bf16.mxu0 0
    %143 = vmatpush1.bf16.msra.mxu0 0
    %144 = vmatprep.mubr.bf16.mxu0 0
    %145 = vmatmul.mubr.bf16.gmra.mrb[0].mxu0 %v95
    %v146 = vpop.f32.mrb[0].mxu0
    %v147 = vadd.f32 0.0, %v146
    %v148 = vpop.f32.mrb[0].mxu0
    %v149 = vpop.f32.mrb[0].mxu0
    %v150 = vadd.f32 0.0, %v149
    %v151 = vpop.f32.mrb[0].mxu0
    %152 = vmatprep.mubr.bf16.mxu0 0
    %153 = vmatmul.mubr.bf16.gmra.mrb[0].mxu0 %v98
    %v154 = vpop.f32.mrb[0].mxu0
    %v155 = vadd.f32 0.0, %v154
    %v156 = vpop.f32.mrb[0].mxu0
    %v157 = vpop.f32.mrb[0].mxu0
    %v158 = vadd.f32 0.0, %v157
    %v159 = vpop.f32.mrb[0].mxu0
    %160 = vmatprep.mubr.bf16.mxu0 0
    %161 = vmatmul.mubr.bf16.gmra.mrb[0].mxu0 %v101
    %v162 = vpop.f32.mrb[0].mxu0
    %v163 = vadd.f32 0.0, %v162
    %v164 = vpop.f32.mrb[0].mxu0
    %v165 = vpop.f32.mrb[0].mxu0
    %v166 = vadd.f32 0.0, %v165
    %v167 = vpop.f32.mrb[0].mxu0
    %168 = vmatprep.mubr.bf16.mxu0 0
    %169 = vmatmul.mubr.bf16.gmra.mrb[0].mxu0 %v104
    %v170 = vpop.f32.mrb[0].mxu0
    %v171 = vadd.f32 0.0, %v170
    %v172 = vpop.f32.mrb[0].mxu0
    %v173 = vpop.f32.mrb[0].mxu0
    %v174 = vadd.f32 0.0, %v173
    %v175 = vpop.f32.mrb[0].mxu0
    %176 = vmatprep.mubr.bf16.mxu0 0
    %177 = vmatmul.mubr.bf16.gmra.mrb[0].mxu0 %v107
    %v178 = vpop.f32.mrb[0].mxu0
    %v179 = vadd.f32 0.0, %v178
    %v180 = vpop.f32.mrb[0].mxu0
    %v181 = vpop.f32.mrb[0].mxu0
    %v182 = vadd.f32 0.0, %v181
    %v183 = vpop.f32.mrb[0].mxu0
    %184 = vmatprep.mubr.bf16.mxu0 0
    %185 = vmatmul.mubr.bf16.gmra.mrb[0].mxu0 %v110
    %v186 = vpop.f32.mrb[0].mxu0
    %v187 = vadd.f32 0.0, %v186
    %v188 = vpop.f32.mrb[0].mxu0
    %v189 = vpop.f32.mrb[0].mxu0
    %v190 = vadd.f32 0.0, %v189
    %v191 = vpop.f32.mrb[0].mxu0
    %192 = vdwg.mxu0
    %v193 = vpack.c.bf16 %v150, %v147
    %v194 = vpack.c.bf16 %v158, %v155
    %v195 = vpack.c.bf16 %v166, %v163
    %v196 = vpack.c.bf16 %v174, %v171
    %v197 = vpack.c.bf16 %v182, %v179
    %v198 = vpack.c.bf16 %v190, %v187
    %vm199 = vcmask 523264
    %200 = vst.msk [vmem:[#allocation2] sm:$0xff] %vm199, %v193
    %201 = vst.msk [vmem:[#allocation2 + $0x8] sm:$0xff] %vm199, %v194
    %202 = vst.msk [vmem:[#allocation2 + $0x10] sm:$0xff] %vm199, %v195
    %203 = vst.msk [vmem:[#allocation2 + $0x18] sm:$0xff] %vm199, %v196
    %204 = vst.msk [vmem:[#allocation2 + $0x20] sm:$0xff] %vm199, %v197
    %205 = vst.msk [vmem:[#allocation2 + $0x28] sm:$0xff] %vm199, %v198
    %v206 = vld [vmem:[%s1] sm:$0xf]
    %v207 = vld [vmem:[%s1 + $0x4] sm:$0xf]
    %v208 = vld [vmem:[%s1 + $0x8] sm:$0xf]
    %v209 = vld [vmem:[%s1 + $0xc] sm:$0xf]
    %v210 = vld [vmem:[%s1 + $0x10] sm:$0xf]
    %v211 = vld [vmem:[%s1 + $0x14] sm:$0xf]
    %v212 = vld [vmem:[%s1 + $0x18] sm:$0xf]
    %v213 = vld [vmem:[%s1 + $0x1c] sm:$0xf]
    %v214 = vld [vmem:[%s1 + $0x20] sm:$0xf]
    %v215 = vld [vmem:[%s1 + $0x24] sm:$0xf]
    %v216 = vld [vmem:[%s1 + $0x28] sm:$0xf]
    %v217 = vld [vmem:[%s1 + $0x2c] sm:$0xf]
    %s218 = scalar_lea.vmem %s0, 8
    %v219 = vld [vmem:[%s218] sm:$0xf]
    %v220 = vld [vmem:[%s218 + $0x4] sm:$0xf]
    %v233 = vunpack.c.l.b16 %v206
    %v234 = vunpack.c.l.b16 %v207
    %v235 = vunpack.c.l.b16 %v208
    %v236 = vunpack.c.l.b16 %v209
    %v237 = vunpack.c.l.b16 %v210
    %v238 = vunpack.c.l.b16 %v211
    %v239 = vunpack.c.l.b16 %v212
    %v240 = vunpack.c.l.b16 %v213
    %v241 = vunpack.c.l.b16 %v214
    %v242 = vunpack.c.l.b16 %v215
    %v243 = vunpack.c.l.b16 %v216
    %v244 = vunpack.c.l.b16 %v217
    %v245 = vpack.c.b16 %v234, %v233
    %v246 = vpack.c.b16 %v236, %v235
    %v247 = vpack.c.b16 %v238, %v237
    %v248 = vpack.c.b16 %v240, %v239
    %v249 = vpack.c.b16 %v242, %v241
    %v250 = vpack.c.b16 %v244, %v243
    %v253 = vunpack.c.l.b16 %v219
    %v254 = vunpack.c.l.b16 %v220
    %v255 = vpack.c.b16 %v254, %v253
    %v258 = vsel %vm93, %v245, 0
    %v261 = vsel %vm93, %v246, 0
    %v264 = vsel %vm93, %v247, 0
    %v267 = vsel %vm93, %v248, 0
    %v270 = vsel %vm93, %v249, 0
    %v273 = vsel %vm93, %v250, 0
    %275 = vmatprep.subr.bf16.mxu0 0
    %276 = vmatpush1.bf16.msra.mxu0 %v255
    %277 = vmatprep.subr.bf16.mxu0 0
    %278 = vmatpush1.bf16.msra.mxu0 0
    %279 = vmatprep.subr.bf16.mxu0 0
    %280 = vmatpush1.bf16.msra.mxu0 0
    %281 = vmatprep.subr.bf16.mxu0 0
    %282 = vmatpush1.bf16.msra.mxu0 0
    %283 = vmatprep.subr.bf16.mxu0 0
    %284 = vmatpush1.bf16.msra.mxu0 0
    %285 = vmatprep.subr.bf16.mxu0 0
    %286 = vmatpush1.bf16.msra.mxu0 0
    %287 = vmatprep.subr.bf16.mxu0 0
    %288 = vmatpush1.bf16.msra.mxu0 0
    %289 = vmatprep.subr.bf16.mxu0 0
    %290 = vmatpush1.bf16.msra.mxu0 0
    %291 = vmatprep.subr.bf16.mxu0 0
    %292 = vmatpush1.bf16.msra.mxu0 0
    %293 = vmatprep.subr.bf16.mxu0 0
    %294 = vmatpush1.bf16.msra.mxu0 0
    %295 = vmatprep.subr.bf16.mxu0 0
    %296 = vmatpush1.bf16.msra.mxu0 0
    %297 = vmatprep.subr.bf16.mxu0 0
    %298 = vmatpush1.bf16.msra.mxu0 0
    %299 = vmatprep.subr.bf16.mxu0 0
    %300 = vmatpush1.bf16.msra.mxu0 0
    %301 = vmatprep.subr.bf16.mxu0 0
    %302 = vmatpush1.bf16.msra.mxu0 0
    %303 = vmatprep.subr.bf16.mxu0 0
    %304 = vmatpush1.bf16.msra.mxu0 0
    %305 = vmatprep.subr.bf16.mxu0 0
    %306 = vmatpush1.bf16.msra.mxu0 0
    %307 = vmatprep.mubr.bf16.mxu0 0
    %308 = vmatmul.mubr.bf16.gmra.mrb[0].mxu0 %v258
    %v309 = vpop.f32.mrb[0].mxu0
    %v310 = vadd.f32 0.0, %v309
    %v311 = vpop.f32.mrb[0].mxu0
    %v312 = vpop.f32.mrb[0].mxu0
    %v313 = vadd.f32 0.0, %v312
    %v314 = vpop.f32.mrb[0].mxu0
    %315 = vmatprep.mubr.bf16.mxu0 0
    %316 = vmatmul.mubr.bf16.gmra.mrb[0].mxu0 %v261
    %v317 = vpop.f32.mrb[0].mxu0
    %v318 = vadd.f32 0.0, %v317
    %v319 = vpop.f32.mrb[0].mxu0
    %v320 = vpop.f32.mrb[0].mxu0
    %v321 = vadd.f32 0.0, %v320
    %v322 = vpop.f32.mrb[0].mxu0
    %323 = vmatprep.mubr.bf16.mxu0 0
    %324 = vmatmul.mubr.bf16.gmra.mrb[0].mxu0 %v264
    %v325 = vpop.f32.mrb[0].mxu0
    %v326 = vadd.f32 0.0, %v325
    %v327 = vpop.f32.mrb[0].mxu0
    %v328 = vpop.f32.mrb[0].mxu0
    %v329 = vadd.f32 0.0, %v328
    %v330 = vpop.f32.mrb[0].mxu0
    %331 = vmatprep.mubr.bf16.mxu0 0
    %332 = vmatmul.mubr.bf16.gmra.mrb[0].mxu0 %v267
    %v333 = vpop.f32.mrb[0].mxu0
    %v334 = vadd.f32 0.0, %v333
    %v335 = vpop.f32.mrb[0].mxu0
    %v336 = vpop.f32.mrb[0].mxu0
    %v337 = vadd.f32 0.0, %v336
    %v338 = vpop.f32.mrb[0].mxu0
    %339 = vmatprep.mubr.bf16.mxu0 0
    %340 = vmatmul.mubr.bf16.gmra.mrb[0].mxu0 %v270
    %v341 = vpop.f32.mrb[0].mxu0
    %v342 = vadd.f32 0.0, %v341
    %v343 = vpop.f32.mrb[0].mxu0
    %v344 = vpop.f32.mrb[0].mxu0
    %v345 = vadd.f32 0.0, %v344
    %v346 = vpop.f32.mrb[0].mxu0
    %347 = vmatprep.mubr.bf16.mxu0 0
    %348 = vmatmul.mubr.bf16.gmra.mrb[0].mxu0 %v273
    %v349 = vpop.f32.mrb[0].mxu0
    %v350 = vadd.f32 0.0, %v349
    %v351 = vpop.f32.mrb[0].mxu0
    %v352 = vpop.f32.mrb[0].mxu0
    %v353 = vadd.f32 0.0, %v352
    %v354 = vpop.f32.mrb[0].mxu0
    %355 = vdwg.mxu0
    %v356 = vpack.c.bf16 %v313, %v310
    %v357 = vpack.c.bf16 %v321, %v318
    %v358 = vpack.c.bf16 %v329, %v326
    %v359 = vpack.c.bf16 %v337, %v334
    %v360 = vpack.c.bf16 %v345, %v342
    %v361 = vpack.c.bf16 %v353, %v350
    %s362 = scalar_lea.vmem [#allocation2], 48
    %363 = vst.msk [vmem:[%s362] sm:$0xff] %vm199, %v356
    %364 = vst.msk [vmem:[%s362 + $0x8] sm:$0xff] %vm199, %v357
    %365 = vst.msk [vmem:[%s362 + $0x10] sm:$0xff] %vm199, %v358
    %366 = vst.msk [vmem:[%s362 + $0x18] sm:$0xff] %vm199, %v359
    %367 = vst.msk [vmem:[%s362 + $0x20] sm:$0xff] %vm199, %v360
    %368 = vst.msk [vmem:[%s362 + $0x28] sm:$0xff] %vm199, %v361
    %v369 = vld [vmem:[#allocation2] sm:$0xff]
    %v370 = vld [vmem:[#allocation2 + $0x30] sm:$0xff]
    %v371 = vld [vmem:[#allocation3 + $0x20] sm:$0xf]
    %v372 = vld [vmem:[#allocation3 + $0x24] sm:$0xf]
    %v373 = vld [vmem:[#allocation3 + $0x28] sm:$0xf]
    %v374 = vld [vmem:[#allocation3 + $0x2c] sm:$0xf]
    %v375 = vld [vmem:[#allocation3 + $0x30] sm:$0xf]
    %v376 = vld [vmem:[#allocation3 + $0x34] sm:$0xf]
    %v377 = vld [vmem:[#allocation3 + $0x38] sm:$0xf]
    %v378 = vld [vmem:[#allocation3 + $0x3c] sm:$0xf]
    %v387 = vunpack.c.l.b16 %v371
    %v388 = vunpack.c.l.b16 %v372
    %v389 = vunpack.c.l.b16 %v373
    %v390 = vunpack.c.l.b16 %v374
    %v391 = vunpack.c.l.b16 %v375
    %v392 = vunpack.c.l.b16 %v376
    %v393 = vunpack.c.l.b16 %v377
    %v394 = vunpack.c.l.b16 %v378
    %v395 = vpack.c.b16 %v388, %v387
    %v396 = vpack.c.b16 %v390, %v389
    %v397 = vpack.c.b16 %v392, %v391
    %v398 = vpack.c.b16 %v394, %v393
    %v404 = vsel %vm199, %v369, 0
    %v407 = vsel %vm199, %v370, 0
    %409 = vmatprep.subr.bf16.mxu0 0
    %410 = vmatpush1.bf16.msra.mxu0 %v395
    %411 = vmatprep.subr.bf16.mxu0 0
    %412 = vmatpush1.bf16.msra.mxu0 %v396
    %413 = vmatprep.subr.bf16.mxu0 0
    %414 = vmatpush1.bf16.msra.mxu0 %v397
    %415 = vmatprep.subr.bf16.mxu0 0
    %416 = vmatpush1.bf16.msra.mxu0 %v398
    %417 = vmatprep.subr.bf16.mxu0 0
    %418 = vmatpush1.bf16.msra.mxu0 0
    %419 = vmatprep.subr.bf16.mxu0 0
    %420 = vmatpush1.bf16.msra.mxu0 0
    %421 = vmatprep.subr.bf16.mxu0 0
    %422 = vmatpush1.bf16.msra.mxu0 0
    %423 = vmatprep.subr.bf16.mxu0 0
    %424 = vmatpush1.bf16.msra.mxu0 0
    %425 = vmatprep.subr.bf16.mxu0 0
    %426 = vmatpush1.bf16.msra.mxu0 0
    %427 = vmatprep.subr.bf16.mxu0 0
    %428 = vmatpush1.bf16.msra.mxu0 0
    %429 = vmatprep.subr.bf16.mxu0 0
    %430 = vmatpush1.bf16.msra.mxu0 0
    %431 = vmatprep.subr.bf16.mxu0 0
    %432 = vmatpush1.bf16.msra.mxu0 0
    %433 = vmatprep.subr.bf16.mxu0 0
    %434 = vmatpush1.bf16.msra.mxu0 0
    %435 = vmatprep.subr.bf16.mxu0 0
    %436 = vmatpush1.bf16.msra.mxu0 0
    %437 = vmatprep.subr.bf16.mxu0 0
    %438 = vmatpush1.bf16.msra.mxu0 0
    %439 = vmatprep.subr.bf16.mxu0 0
    %440 = vmatpush1.bf16.msra.mxu0 0
    %441 = vmatprep.mubr.bf16.mxu0 0
    %442 = vmatmul.mubr.bf16.gmra.mrb[0].mxu0 %v404
    %v443 = vpop.f32.mrb[0].mxu0
    %v444 = vadd.f32 0.0, %v443
    %v445 = vpop.f32.mrb[0].mxu0
    %v446 = vpop.f32.mrb[0].mxu0
    %v447 = vadd.f32 0.0, %v446
    %v448 = vpop.f32.mrb[0].mxu0
    %449 = vmatprep.mubr.bf16.mxu0 0
    %450 = vmatmul.mubr.bf16.gmra.mrb[0].mxu0 %v407
    %v451 = vpop.f32.mrb[0].mxu0
    %v452 = vadd.f32 0.0, %v451
    %v453 = vpop.f32.mrb[0].mxu0
    %v454 = vpop.f32.mrb[0].mxu0
    %v455 = vadd.f32 0.0, %v454
    %v456 = vpop.f32.mrb[0].mxu0
    %457 = vdwg.mxu0
    %v460 = vunpack.c.l.b16 %v35
    %v461 = vunpack.c.l.b16 %v36
    %v462 = vpack.c.b16 %v461, %v460
    %v471 = vunpack.c.l.b16 %v37
    %v472 = vunpack.c.l.b16 %v38
    %v473 = vunpack.c.l.b16 %v39
    %v474 = vunpack.c.l.b16 %v40
    %v475 = vunpack.c.l.b16 %v41
    %v476 = vunpack.c.l.b16 %v42
    %v477 = vunpack.c.l.b16 %v43
    %v478 = vunpack.c.l.b16 %v44
    %v479 = vpack.c.b16 %v472, %v471
    %v480 = vpack.c.b16 %v474, %v473
    %v481 = vpack.c.b16 %v476, %v475
    %v482 = vpack.c.b16 %v478, %v477
    %v488 = vsel %vm199, %v91, 0
    %v491 = vsel %vm199, %v462, 0
    %493 = vmatprep.subr.bf16.mxu0 0
    %494 = vmatpush1.bf16.msra.mxu0 %v479
    %495 = vmatprep.subr.bf16.mxu0 0
    %496 = vmatpush1.bf16.msra.mxu0 %v480
    %497 = vmatprep.subr.bf16.mxu0 0
    %498 = vmatpush1.bf16.msra.mxu0 %v481
    %499 = vmatprep.subr.bf16.mxu0 0
    %500 = vmatpush1.bf16.msra.mxu0 %v482
    %501 = vmatprep.subr.bf16.mxu0 0
    %502 = vmatpush1.bf16.msra.mxu0 0
    %503 = vmatprep.subr.bf16.mxu0 0
    %504 = vmatpush1.bf16.msra.mxu0 0
    %505 = vmatprep.subr.bf16.mxu0 0
    %506 = vmatpush1.bf16.msra.mxu0 0
    %507 = vmatprep.subr.bf16.mxu0 0
    %508 = vmatpush1.bf16.msra.mxu0 0
    %509 = vmatprep.subr.bf16.mxu0 0
    %510 = vmatpush1.bf16.msra.mxu0 0
    %511 = vmatprep.subr.bf16.mxu0 0
    %512 = vmatpush1.bf16.msra.mxu0 0
    %513 = vmatprep.subr.bf16.mxu0 0
    %514 = vmatpush1.bf16.msra.mxu0 0
    %515 = vmatprep.subr.bf16.mxu0 0
    %516 = vmatpush1.bf16.msra.mxu0 0
    %517 = vmatprep.subr.bf16.mxu0 0
    %518 = vmatpush1.bf16.msra.mxu0 0
    %519 = vmatprep.subr.bf16.mxu0 0
    %520 = vmatpush1.bf16.msra.mxu0 0
    %521 = vmatprep.subr.bf16.mxu0 0
    %522 = vmatpush1.bf16.msra.mxu0 0
    %523 = vmatprep.subr.bf16.mxu0 0
    %524 = vmatpush1.bf16.msra.mxu0 0
    %525 = vmatprep.mubr.bf16.mxu0 0
    %526 = vmatmul.mubr.bf16.gmra.mrb[0].mxu0 %v488
    %v527 = vpop.f32.mrb[0].mxu0
    %v528 = vadd.f32 %v444, %v527
    %v529 = vpop.f32.mrb[0].mxu0
    %v530 = vpop.f32.mrb[0].mxu0
    %v531 = vadd.f32 %v447, %v530
    %v532 = vpop.f32.mrb[0].mxu0
    %533 = vmatprep.mubr.bf16.mxu0 0
    %534 = vmatmul.mubr.bf16.gmra.mrb[0].mxu0 %v491
    %v535 = vpop.f32.mrb[0].mxu0
    %v536 = vadd.f32 %v452, %v535
    %v537 = vpop.f32.mrb[0].mxu0
    %v538 = vpop.f32.mrb[0].mxu0
    %v539 = vadd.f32 %v455, %v538
    %v540 = vpop.f32.mrb[0].mxu0
    %541 = vdwg.mxu0
    %v542 = vld [vmem:[#allocation2 + $0x8] sm:$0xff]
    %v543 = vld [vmem:[#allocation2 + $0x38] sm:$0xff]
    %v544 = vld [vmem:[#allocation3 + $0x40] sm:$0xf]
    %v545 = vld [vmem:[#allocation3 + $0x44] sm:$0xf]
    %v546 = vld [vmem:[#allocation3 + $0x48] sm:$0xf]
    %v547 = vld [vmem:[#allocation3 + $0x4c] sm:$0xf]
    %v548 = vld [vmem:[#allocation3 + $0x50] sm:$0xf]
    %v549 = vld [vmem:[#allocation3 + $0x54] sm:$0xf]
    %v550 = vld [vmem:[#allocation3 + $0x58] sm:$0xf]
    %v551 = vld [vmem:[#allocation3 + $0x5c] sm:$0xf]
    %v560 = vunpack.c.l.b16 %v544
    %v561 = vunpack.c.l.b16 %v545
    %v562 = vunpack.c.l.b16 %v546
    %v563 = vunpack.c.l.b16 %v547
    %v564 = vunpack.c.l.b16 %v548
    %v565 = vunpack.c.l.b16 %v549
    %v566 = vunpack.c.l.b16 %v550
    %v567 = vunpack.c.l.b16 %v551
    %v568 = vpack.c.b16 %v561, %v560
    %v569 = vpack.c.b16 %v563, %v562
    %v570 = vpack.c.b16 %v565, %v564
    %v571 = vpack.c.b16 %v567, %v566
    %v577 = vsel %vm199, %v542, 0
    %v580 = vsel %vm199, %v543, 0
    %582 = vmatprep.subr.bf16.mxu0 0
    %583 = vmatpush1.bf16.msra.mxu0 %v568
    %584 = vmatprep.subr.bf16.mxu0 0
    %585 = vmatpush1.bf16.msra.mxu0 %v569
    %586 = vmatprep.subr.bf16.mxu0 0
    %587 = vmatpush1.bf16.msra.mxu0 %v570
    %588 = vmatprep.subr.bf16.mxu0 0
    %589 = vmatpush1.bf16.msra.mxu0 %v571
    %590 = vmatprep.subr.bf16.mxu0 0
    %591 = vmatpush1.bf16.msra.mxu0 0
    %592 = vmatprep.subr.bf16.mxu0 0
    %593 = vmatpush1.bf16.msra.mxu0 0
    %594 = vmatprep.subr.bf16.mxu0 0
    %595 = vmatpush1.bf16.msra.mxu0 0
    %596 = vmatprep.subr.bf16.mxu0 0
    %597 = vmatpush1.bf16.msra.mxu0 0
    %598 = vmatprep.subr.bf16.mxu0 0
    %599 = vmatpush1.bf16.msra.mxu0 0
    %600 = vmatprep.subr.bf16.mxu0 0
    %601 = vmatpush1.bf16.msra.mxu0 0
    %602 = vmatprep.subr.bf16.mxu0 0
    %603 = vmatpush1.bf16.msra.mxu0 0
    %604 = vmatprep.subr.bf16.mxu0 0
    %605 = vmatpush1.bf16.msra.mxu0 0
    %606 = vmatprep.subr.bf16.mxu0 0
    %607 = vmatpush1.bf16.msra.mxu0 0
    %608 = vmatprep.subr.bf16.mxu0 0
    %609 = vmatpush1.bf16.msra.mxu0 0
    %610 = vmatprep.subr.bf16.mxu0 0
    %611 = vmatpush1.bf16.msra.mxu0 0
    %612 = vmatprep.subr.bf16.mxu0 0
    %613 = vmatpush1.bf16.msra.mxu0 0
    %614 = vmatprep.mubr.bf16.mxu0 0
    %615 = vmatmul.mubr.bf16.gmra.mrb[0].mxu0 %v577
    %v616 = vpop.f32.mrb[0].mxu0
    %v617 = vadd.f32 0.0, %v616
    %v618 = vpop.f32.mrb[0].mxu0
    %v619 = vpop.f32.mrb[0].mxu0
    %v620 = vadd.f32 0.0, %v619
    %v621 = vpop.f32.mrb[0].mxu0
    %622 = vmatprep.mubr.bf16.mxu0 0
    %623 = vmatmul.mubr.bf16.gmra.mrb[0].mxu0 %v580
    %v624 = vpop.f32.mrb[0].mxu0
    %v625 = vadd.f32 0.0, %v624
    %v626 = vpop.f32.mrb[0].mxu0
    %v627 = vpop.f32.mrb[0].mxu0
    %v628 = vadd.f32 0.0, %v627
    %v629 = vpop.f32.mrb[0].mxu0
    %630 = vdwg.mxu0
    %v631 = vadd.f32 %v528, %v617
    %v632 = vadd.f32 %v531, %v620
    %v633 = vadd.f32 %v536, %v625
    %v634 = vadd.f32 %v539, %v628
    %v635 = vld [vmem:[#allocation2 + $0x10] sm:$0xff]
    %v636 = vld [vmem:[#allocation2 + $0x40] sm:$0xff]
    %v637 = vld [vmem:[#allocation3 + $0x60] sm:$0xf]
    %v638 = vld [vmem:[#allocation3 + $0x64] sm:$0xf]
    %v639 = vld [vmem:[#allocation3 + $0x68] sm:$0xf]
    %v640 = vld [vmem:[#allocation3 + $0x6c] sm:$0xf]
    %v641 = vld [vmem:[#allocation3 + $0x70] sm:$0xf]
    %v642 = vld [vmem:[#allocation3 + $0x74] sm:$0xf]
    %v643 = vld [vmem:[#allocation3 + $0x78] sm:$0xf]
    %v644 = vld [vmem:[#allocation3 + $0x7c] sm:$0xf]
    %v653 = vunpack.c.l.b16 %v637
    %v654 = vunpack.c.l.b16 %v638
    %v655 = vunpack.c.l.b16 %v639
    %v656 = vunpack.c.l.b16 %v640
    %v657 = vunpack.c.l.b16 %v641
    %v658 = vunpack.c.l.b16 %v642
    %v659 = vunpack.c.l.b16 %v643
    %v660 = vunpack.c.l.b16 %v644
    %v661 = vpack.c.b16 %v654, %v653
    %v662 = vpack.c.b16 %v656, %v655
    %v663 = vpack.c.b16 %v658, %v657
    %v664 = vpack.c.b16 %v660, %v659
    %v670 = vsel %vm199, %v635, 0
    %v673 = vsel %vm199, %v636, 0
    %675 = vmatprep.subr.bf16.mxu0 0
    %676 = vmatpush1.bf16.msra.mxu0 %v661
    %677 = vmatprep.subr.bf16.mxu0 0
    %678 = vmatpush1.bf16.msra.mxu0 %v662
    %679 = vmatprep.subr.bf16.mxu0 0
    %680 = vmatpush1.bf16.msra.mxu0 %v663
    %681 = vmatprep.subr.bf16.mxu0 0
    %682 = vmatpush1.bf16.msra.mxu0 %v664
    %683 = vmatprep.subr.bf16.mxu0 0
    %684 = vmatpush1.bf16.msra.mxu0 0
    %685 = vmatprep.subr.bf16.mxu0 0
    %686 = vmatpush1.bf16.msra.mxu0 0
    %687 = vmatprep.subr.bf16.mxu0 0
    %688 = vmatpush1.bf16.msra.mxu0 0
    %689 = vmatprep.subr.bf16.mxu0 0
    %690 = vmatpush1.bf16.msra.mxu0 0
    %691 = vmatprep.subr.bf16.mxu0 0
    %692 = vmatpush1.bf16.msra.mxu0 0
    %693 = vmatprep.subr.bf16.mxu0 0
    %694 = vmatpush1.bf16.msra.mxu0 0
    %695 = vmatprep.subr.bf16.mxu0 0
    %696 = vmatpush1.bf16.msra.mxu0 0
    %697 = vmatprep.subr.bf16.mxu0 0
    %698 = vmatpush1.bf16.msra.mxu0 0
    %699 = vmatprep.subr.bf16.mxu0 0
    %700 = vmatpush1.bf16.msra.mxu0 0
    %701 = vmatprep.subr.bf16.mxu0 0
    %702 = vmatpush1.bf16.msra.mxu0 0
    %703 = vmatprep.subr.bf16.mxu0 0
    %704 = vmatpush1.bf16.msra.mxu0 0
    %705 = vmatprep.subr.bf16.mxu0 0
    %706 = vmatpush1.bf16.msra.mxu0 0
    %707 = vmatprep.mubr.bf16.mxu0 0
    %708 = vmatmul.mubr.bf16.gmra.mrb[0].mxu0 %v670
    %v709 = vpop.f32.mrb[0].mxu0
    %v710 = vadd.f32 0.0, %v709
    %v711 = vpop.f32.mrb[0].mxu0
    %v712 = vpop.f32.mrb[0].mxu0
    %v713 = vadd.f32 0.0, %v712
    %v714 = vpop.f32.mrb[0].mxu0
    %715 = vmatprep.mubr.bf16.mxu0 0
    %716 = vmatmul.mubr.bf16.gmra.mrb[0].mxu0 %v673
    %v717 = vpop.f32.mrb[0].mxu0
    %v718 = vadd.f32 0.0, %v717
    %v719 = vpop.f32.mrb[0].mxu0
    %v720 = vpop.f32.mrb[0].mxu0
    %v721 = vadd.f32 0.0, %v720
    %v722 = vpop.f32.mrb[0].mxu0
    %723 = vdwg.mxu0
    %v724 = vadd.f32 %v631, %v710
    %v725 = vadd.f32 %v632, %v713
    %v726 = vadd.f32 %v633, %v718
    %v727 = vadd.f32 %v634, %v721
    %v728 = vld [vmem:[#allocation2 + $0x18] sm:$0xff]
    %v729 = vld [vmem:[#allocation2 + $0x48] sm:$0xff]
    %v730 = vld [vmem:[#allocation3 + $0x80] sm:$0xf]
    %v731 = vld [vmem:[#allocation3 + $0x84] sm:$0xf]
    %v732 = vld [vmem:[#allocation3 + $0x88] sm:$0xf]
    %v733 = vld [vmem:[#allocation3 + $0x8c] sm:$0xf]
    %v734 = vld [vmem:[#allocation3 + $0x90] sm:$0xf]
    %v735 = vld [vmem:[#allocation3 + $0x94] sm:$0xf]
    %v736 = vld [vmem:[#allocation3 + $0x98] sm:$0xf]
    %v737 = vld [vmem:[#allocation3 + $0x9c] sm:$0xf]
    %v746 = vunpack.c.l.b16 %v730
    %v747 = vunpack.c.l.b16 %v731
    %v748 = vunpack.c.l.b16 %v732
    %v749 = vunpack.c.l.b16 %v733
    %v750 = vunpack.c.l.b16 %v734
    %v751 = vunpack.c.l.b16 %v735
    %v752 = vunpack.c.l.b16 %v736
    %v753 = vunpack.c.l.b16 %v737
    %v754 = vpack.c.b16 %v747, %v746
    %v755 = vpack.c.b16 %v749, %v748
    %v756 = vpack.c.b16 %v751, %v750
    %v757 = vpack.c.b16 %v753, %v752
    %v763 = vsel %vm199, %v728, 0
    %v766 = vsel %vm199, %v729, 0
    %768 = vmatprep.subr.bf16.mxu0 0
    %769 = vmatpush1.bf16.msra.mxu0 %v754
    %770 = vmatprep.subr.bf16.mxu0 0
    %771 = vmatpush1.bf16.msra.mxu0 %v755
    %772 = vmatprep.subr.bf16.mxu0 0
    %773 = vmatpush1.bf16.msra.mxu0 %v756
    %774 = vmatprep.subr.bf16.mxu0 0
    %775 = vmatpush1.bf16.msra.mxu0 %v757
    %776 = vmatprep.subr.bf16.mxu0 0
    %777 = vmatpush1.bf16.msra.mxu0 0
    %778 = vmatprep.subr.bf16.mxu0 0
    %779 = vmatpush1.bf16.msra.mxu0 0
    %780 = vmatprep.subr.bf16.mxu0 0
    %781 = vmatpush1.bf16.msra.mxu0 0
    %782 = vmatprep.subr.bf16.mxu0 0
    %783 = vmatpush1.bf16.msra.mxu0 0
    %784 = vmatprep.subr.bf16.mxu0 0
    %785 = vmatpush1.bf16.msra.mxu0 0
    %786 = vmatprep.subr.bf16.mxu0 0
    %787 = vmatpush1.bf16.msra.mxu0 0
    %788 = vmatprep.subr.bf16.mxu0 0
    %789 = vmatpush1.bf16.msra.mxu0 0
    %790 = vmatprep.subr.bf16.mxu0 0
    %791 = vmatpush1.bf16.msra.mxu0 0
    %792 = vmatprep.subr.bf16.mxu0 0
    %793 = vmatpush1.bf16.msra.mxu0 0
    %794 = vmatprep.subr.bf16.mxu0 0
    %795 = vmatpush1.bf16.msra.mxu0 0
    %796 = vmatprep.subr.bf16.mxu0 0
    %797 = vmatpush1.bf16.msra.mxu0 0
    %798 = vmatprep.subr.bf16.mxu0 0
    %799 = vmatpush1.bf16.msra.mxu0 0
    %800 = vmatprep.mubr.bf16.mxu0 0
    %801 = vmatmul.mubr.bf16.gmra.mrb[0].mxu0 %v763
    %v802 = vpop.f32.mrb[0].mxu0
    %v803 = vadd.f32 0.0, %v802
    %v804 = vpop.f32.mrb[0].mxu0
    %v805 = vpop.f32.mrb[0].mxu0
    %v806 = vadd.f32 0.0, %v805
    %v807 = vpop.f32.mrb[0].mxu0
    %808 = vmatprep.mubr.bf16.mxu0 0
    %809 = vmatmul.mubr.bf16.gmra.mrb[0].mxu0 %v766
    %v810 = vpop.f32.mrb[0].mxu0
    %v811 = vadd.f32 0.0, %v810
    %v812 = vpop.f32.mrb[0].mxu0
    %v813 = vpop.f32.mrb[0].mxu0
    %v814 = vadd.f32 0.0, %v813
    %v815 = vpop.f32.mrb[0].mxu0
    %816 = vdwg.mxu0
    %v817 = vadd.f32 %v724, %v803
    %v818 = vadd.f32 %v725, %v806
    %v819 = vadd.f32 %v726, %v811
    %v820 = vadd.f32 %v727, %v814
    %v821 = vld [vmem:[#allocation2 + $0x20] sm:$0xff]
    %v822 = vld [vmem:[#allocation2 + $0x50] sm:$0xff]
    %v823 = vld [vmem:[#allocation3 + $0xa0] sm:$0xf]
    %v824 = vld [vmem:[#allocation3 + $0xa4] sm:$0xf]
    %v825 = vld [vmem:[#allocation3 + $0xa8] sm:$0xf]
    %v826 = vld [vmem:[#allocation3 + $0xac] sm:$0xf]
    %v827 = vld [vmem:[#allocation3 + $0xb0] sm:$0xf]
    %v828 = vld [vmem:[#allocation3 + $0xb4] sm:$0xf]
    %v829 = vld [vmem:[#allocation3 + $0xb8] sm:$0xf]
    %v830 = vld [vmem:[#allocation3 + $0xbc] sm:$0xf]
    %v839 = vunpack.c.l.b16 %v823
    %v840 = vunpack.c.l.b16 %v824
    %v841 = vunpack.c.l.b16 %v825
    %v842 = vunpack.c.l.b16 %v826
    %v843 = vunpack.c.l.b16 %v827
    %v844 = vunpack.c.l.b16 %v828
    %v845 = vunpack.c.l.b16 %v829
    %v846 = vunpack.c.l.b16 %v830
    %v847 = vpack.c.b16 %v840, %v839
    %v848 = vpack.c.b16 %v842, %v841
    %v849 = vpack.c.b16 %v844, %v843
    %v850 = vpack.c.b16 %v846, %v845
    %v856 = vsel %vm199, %v821, 0
    %v859 = vsel %vm199, %v822, 0
    %861 = vmatprep.subr.bf16.mxu0 0
    %862 = vmatpush1.bf16.msra.mxu0 %v847
    %863 = vmatprep.subr.bf16.mxu0 0
    %864 = vmatpush1.bf16.msra.mxu0 %v848
    %865 = vmatprep.subr.bf16.mxu0 0
    %866 = vmatpush1.bf16.msra.mxu0 %v849
    %867 = vmatprep.subr.bf16.mxu0 0
    %868 = vmatpush1.bf16.msra.mxu0 %v850
    %869 = vmatprep.subr.bf16.mxu0 0
    %870 = vmatpush1.bf16.msra.mxu0 0
    %871 = vmatprep.subr.bf16.mxu0 0
    %872 = vmatpush1.bf16.msra.mxu0 0
    %873 = vmatprep.subr.bf16.mxu0 0
    %874 = vmatpush1.bf16.msra.mxu0 0
    %875 = vmatprep.subr.bf16.mxu0 0
    %876 = vmatpush1.bf16.msra.mxu0 0
    %877 = vmatprep.subr.bf16.mxu0 0
    %878 = vmatpush1.bf16.msra.mxu0 0
    %879 = vmatprep.subr.bf16.mxu0 0
    %880 = vmatpush1.bf16.msra.mxu0 0
    %881 = vmatprep.subr.bf16.mxu0 0
    %882 = vmatpush1.bf16.msra.mxu0 0
    %883 = vmatprep.subr.bf16.mxu0 0
    %884 = vmatpush1.bf16.msra.mxu0 0
    %885 = vmatprep.subr.bf16.mxu0 0
    %886 = vmatpush1.bf16.msra.mxu0 0
    %887 = vmatprep.subr.bf16.mxu0 0
    %888 = vmatpush1.bf16.msra.mxu0 0
    %889 = vmatprep.subr.bf16.mxu0 0
    %890 = vmatpush1.bf16.msra.mxu0 0
    %891 = vmatprep.subr.bf16.mxu0 0
    %892 = vmatpush1.bf16.msra.mxu0 0
    %893 = vmatprep.mubr.bf16.mxu0 0
    %894 = vmatmul.mubr.bf16.gmra.mrb[0].mxu0 %v856
    %v895 = vpop.f32.mrb[0].mxu0
    %v896 = vadd.f32 0.0, %v895
    %v897 = vpop.f32.mrb[0].mxu0
    %v898 = vpop.f32.mrb[0].mxu0
    %v899 = vadd.f32 0.0, %v898
    %v900 = vpop.f32.mrb[0].mxu0
    %901 = vmatprep.mubr.bf16.mxu0 0
    %902 = vmatmul.mubr.bf16.gmra.mrb[0].mxu0 %v859
    %v903 = vpop.f32.mrb[0].mxu0
    %v904 = vadd.f32 0.0, %v903
    %v905 = vpop.f32.mrb[0].mxu0
    %v906 = vpop.f32.mrb[0].mxu0
    %v907 = vadd.f32 0.0, %v906
    %v908 = vpop.f32.mrb[0].mxu0
    %909 = vdwg.mxu0
    %v910 = vadd.f32 %v817, %v896
    %v911 = vadd.f32 %v818, %v899
    %v912 = vadd.f32 %v819, %v904
    %v913 = vadd.f32 %v820, %v907
    %v914 = vld [vmem:[#allocation2 + $0x28] sm:$0xff]
    %v915 = vld [vmem:[#allocation2 + $0x58] sm:$0xff]
    %v916 = vld [vmem:[#allocation3 + $0xc0] sm:$0xf]
    %v917 = vld [vmem:[#allocation3 + $0xc4] sm:$0xf]
    %v918 = vld [vmem:[#allocation3 + $0xc8] sm:$0xf]
    %v919 = vld [vmem:[#allocation3 + $0xcc] sm:$0xf]
    %v920 = vld [vmem:[#allocation3 + $0xd0] sm:$0xf]
    %v921 = vld [vmem:[#allocation3 + $0xd4] sm:$0xf]
    %v922 = vld [vmem:[#allocation3 + $0xd8] sm:$0xf]
    %v923 = vld [vmem:[#allocation3 + $0xdc] sm:$0xf]
    %v932 = vunpack.c.l.b16 %v916
    %v933 = vunpack.c.l.b16 %v917
    %v934 = vunpack.c.l.b16 %v918
    %v935 = vunpack.c.l.b16 %v919
    %v936 = vunpack.c.l.b16 %v920
    %v937 = vunpack.c.l.b16 %v921
    %v938 = vunpack.c.l.b16 %v922
    %v939 = vunpack.c.l.b16 %v923
    %v940 = vpack.c.b16 %v933, %v932
    %v941 = vpack.c.b16 %v935, %v934
    %v942 = vpack.c.b16 %v937, %v936
    %v943 = vpack.c.b16 %v939, %v938
    %v949 = vsel %vm199, %v914, 0
    %v952 = vsel %vm199, %v915, 0
    %954 = vmatprep.subr.bf16.mxu0 0
    %955 = vmatpush1.bf16.msra.mxu0 %v940
    %956 = vmatprep.subr.bf16.mxu0 0
    %957 = vmatpush1.bf16.msra.mxu0 %v941
    %958 = vmatprep.subr.bf16.mxu0 0
    %959 = vmatpush1.bf16.msra.mxu0 %v942
    %960 = vmatprep.subr.bf16.mxu0 0
    %961 = vmatpush1.bf16.msra.mxu0 %v943
    %962 = vmatprep.subr.bf16.mxu0 0
    %963 = vmatpush1.bf16.msra.mxu0 0
    %964 = vmatprep.subr.bf16.mxu0 0
    %965 = vmatpush1.bf16.msra.mxu0 0
    %966 = vmatprep.subr.bf16.mxu0 0
    %967 = vmatpush1.bf16.msra.mxu0 0
    %968 = vmatprep.subr.bf16.mxu0 0
    %969 = vmatpush1.bf16.msra.mxu0 0
    %970 = vmatprep.subr.bf16.mxu0 0
    %971 = vmatpush1.bf16.msra.mxu0 0
    %972 = vmatprep.subr.bf16.mxu0 0
    %973 = vmatpush1.bf16.msra.mxu0 0
    %974 = vmatprep.subr.bf16.mxu0 0
    %975 = vmatpush1.bf16.msra.mxu0 0
    %976 = vmatprep.subr.bf16.mxu0 0
    %977 = vmatpush1.bf16.msra.mxu0 0
    %978 = vmatprep.subr.bf16.mxu0 0
    %979 = vmatpush1.bf16.msra.mxu0 0
    %980 = vmatprep.subr.bf16.mxu0 0
    %981 = vmatpush1.bf16.msra.mxu0 0
    %982 = vmatprep.subr.bf16.mxu0 0
    %983 = vmatpush1.bf16.msra.mxu0 0
    %984 = vmatprep.subr.bf16.mxu0 0
    %985 = vmatpush1.bf16.msra.mxu0 0
    %986 = vmatprep.mubr.bf16.mxu0 0
    %987 = vmatmul.mubr.bf16.gmra.mrb[0].mxu0 %v949
    %v988 = vpop.f32.mrb[0].mxu0
    %v989 = vadd.f32 0.0, %v988
    %v990 = vpop.f32.mrb[0].mxu0
    %v991 = vpop.f32.mrb[0].mxu0
    %v992 = vadd.f32 0.0, %v991
    %v993 = vpop.f32.mrb[0].mxu0
    %994 = vmatprep.mubr.bf16.mxu0 0
    %995 = vmatmul.mubr.bf16.gmra.mrb[0].mxu0 %v952
    %v996 = vpop.f32.mrb[0].mxu0
    %v997 = vadd.f32 0.0, %v996
    %v998 = vpop.f32.mrb[0].mxu0
    %v999 = vpop.f32.mrb[0].mxu0
    %v1000 = vadd.f32 0.0, %v999
    %v1001 = vpop.f32.mrb[0].mxu0
    %1002 = vdwg.mxu0
    %v1003 = vadd.f32 %v910, %v989
    %v1004 = vadd.f32 %v911, %v992
    %v1005 = vadd.f32 %v912, %v997
    %v1006 = vadd.f32 %v913, %v1000
    %v1007 = vld [vmem:[%s3] sm:$0x1]
    %v1009 = vlaneseq
    %v1010 = vshrl.u32 %v1009, 7
    %v1011 = vsub.s32 0, %v1010
    %v1012 = vrot.slane %v1007, %v1011
    %v1014 = vadd.f32 %v1003, %v1012
    %v1015 = vadd.f32 %v1004, %v1012
    %v1016 = vadd.f32 %v1005, %v1012
    %v1017 = vadd.f32 %v1006, %v1012
    %1018 = vst [vmem:[#allocation6] sm:$0xff] %v1014
    %1019 = vst [vmem:[#allocation6 + $0x8] sm:$0xff] %v1015
    %1020 = vst [vmem:[#allocation6 + $0x10] sm:$0xff] %v1016
    %1021 = vst [vmem:[#allocation6 + $0x18] sm:$0xff] %v1017
    // Predicated region
    $region22: #{tpu_custom_call.1} parent=1 // pred_check
      _
    $region23: #{tpu_custom_call.1} parent=1 // pred_check_branch
      %1023 = sbr.rel (0) target = $region25
    $region24: #{tpu_custom_call.1} parent=1 // pred_region
      %s1025 = ssub.s32 512, 512
      %1026 = vsyncadd [#allocation5], %s1025
      %s1027 = sshll.u32 [#allocation6], 4
      %s1028 = int_to_ptr.vmem [resolvable:$true] %s1027
      %1033 = dma.vmem_to_hbm [thread:$0]  %s1028, 512, %s4, [#allocation5], 128, 128, 8
    $region25: #{tpu_custom_call.1} parent=1 // pred_fallthru
      _
    // Predicated region
    $region26: #{tpu_custom_call.1} parent=1 // pred_check
      _
    $region27: #{tpu_custom_call.1} parent=1 // pred_check_branch
      %1035 = sbr.rel (0) target = $region29
    $region28: #{tpu_custom_call.1} parent=1 // pred_region
      %1036 = dma.done [#allocation5], 512
    $region29: #{tpu_custom_call.1} parent=1 // pred_fallthru
      _
    %1037 = vsyncpa [#allocation4], 1
    %1038 = vsyncpa [#allocation5], 1

</llo_original>
